<compile_context>
chip_gen: v7x
topology: tpu7x:2x2x1
jax: 0.10.0
libtpu: 0.0.40
codegen_flags: <defaults>
</compile_context>

<pallas_src>
import functools

import jax
import jax.numpy as jnp
from jax.experimental import pallas as pl
from jax.experimental.pallas import tpu as pltpu


def _hard_swish(v):
    # relu6(v + 3) / 6 * v   (computed in f32 on the VPU)
    return jnp.clip(v + 3.0, 0.0, 6.0) * (1.0 / 6.0) * v


def _round_up(x, m):
    return (x + m - 1) // m * m


def critic_kernel(x_ref, w0_ref, b0_ref, wf_ref, b1_ref, w2b_ref, b2_ref,
                  wo1_ref, wo2_ref, wo3a_ref, wo3b_ref, bo_ref, o_ref):
    """One batch tile of the fused DenseNet critic.

    Feature-axis concatenations are expressed as split/fused matmuls
    (cat(u, v) @ W == u @ W_top + v @ W_bot), avoiding lane-axis concats.
    Matmul operands are bf16 (MXU native), accumulation is f32.
    """
    M = b1_ref.shape[1]

    # dense0 + hard_swish -> x1 (TB, M), f32
    z0 = (jnp.dot(x_ref[...], w0_ref[...], preferred_element_type=jnp.float32)
          + b0_ref[...])
    x1 = _hard_swish(z0)
    # dense_o partial product accumulated immediately (keeps only the bf16
    # copy of x1 live for the fused matmul below).
    t = x1 * wo1_ref[...]
    x1_bf = x1.astype(jnp.bfloat16)

    # Fused MXU pass: wf = [w2a | w1] of shape (M, 3M) computes the x1-half
    # of dense2 (lanes [0, 2M)) AND dense1 (lanes [2M, 3M)) at once.
    zf = jnp.dot(x1_bf, wf_ref[...], preferred_element_type=jnp.float32)

    z1 = zf[:, 2 * M:] + b1_ref[...]
    h1 = _hard_swish(z1)
    t = t + h1 * wo2_ref[...]
    h1_bf = h1.astype(jnp.bfloat16)

    # dense2's h1-half + hard_swish -> h2 (TB, 2M), f32.  h2 never needs a
    # bf16 copy: it only feeds the VPU output layer.
    z2 = (zf[:, :2 * M]
          + jnp.dot(h1_bf, w2b_ref[...], preferred_element_type=jnp.float32)
          + b2_ref[...])
    h2 = _hard_swish(z2)
    t = t + h2[:, :M] * wo3a_ref[...] + h2[:, M:] * wo3b_ref[...]

    # Single cross-lane reduction over M lanes (was three over M/M/2M lanes).
    # TODO(synk): dropout before dense_o is identity (eval mode).
    out = jnp.sum(t, axis=-1, keepdims=True) + bo_ref[0, 0]
    o_ref[...] = out.astype(o_ref.dtype)


def init_critic_params(key, state_dim, action_dim, mid_dim):
    """Deterministic synthetic parameters.  Weights stored (in, out)."""
    inp_dim = state_dim + action_dim
    ks = jax.random.split(key, 8)

    def lin(kw, kb, fan_in, fan_out):
        bound = 1.0 / jnp.sqrt(float(fan_in))
        w = jax.random.uniform(kw, (fan_in, fan_out), jnp.float32, -bound, bound)
        b = jax.random.uniform(kb, (1, fan_out), jnp.float32, -bound, bound)
        return w, b

    w0, b0 = lin(ks[0], ks[1], inp_dim, mid_dim)
    w1, b1 = lin(ks[2], ks[3], mid_dim, mid_dim)
    w2, b2 = lin(ks[4], ks[5], 2 * mid_dim, 2 * mid_dim)
    wo, bo = lin(ks[6], ks[7], 4 * mid_dim, 1)

    # spectral_norm(dense_o): divide weight by its largest singular value.
    # For a (out=1, in=4M) linear layer that is just the L2 norm of the weight.
    sigma = jnp.linalg.norm(wo)
    wo = wo / sigma
    return dict(w0=w0, b0=b0, w1=w1, b1=b1, w2=w2, b2=b2, wo=wo, bo=bo)


@functools.partial(jax.jit, static_argnames=("block_b",))
def critic_forward(s, a, params, *, block_b=4096):
    B, S = s.shape
    A = a.shape[1]
    SA = S + A
    M = params["w0"].shape[1]
    # mid_dim must be sublane-aligned (bf16 packs 16 rows/sublane-tile) so the
    # pre-split weight chunks and the 2M/3M feature widths stay tile-aligned.
    assert M % 16 == 0, "mid_dim must be a multiple of 16"

    bf16, f32 = jnp.bfloat16, jnp.float32

    # ---- batch tiling ----------------------------------------------------
    # Cap TB from the live activation footprint (~16 * TB * M * 4 B for
    # zf/z2/t/x1/h1/h2 + bf16 copies) so the default scoped-VMEM limit holds
    # even at larger mid_dim and within v7x's 64 MiB physical VMEM.
    act_bytes_per_row = 16 * M * 4
    tb_cap = max(512, ((12 << 20) // act_bytes_per_row) // 128 * 128)
    eff_block = min(block_b, tb_cap)

    if B > eff_block:
        # choose tile count first so padding stays under one tile even for
        # awkward batch sizes (e.g. B just over a tile boundary).
        nt = pl.cdiv(B, eff_block)
        TB = _round_up(pl.cdiv(B, nt), 128)
    elif B >= 2048:
        # split into >=2 tiles so the "parallel" batch axis spans both v7x
        # TensorCores (near-zero cost on single-core v5e/v6e).
        nt = 2
        TB = _round_up(pl.cdiv(B, 2), 128)
    else:
        nt = 1
        TB = _round_up(B, 16)
    Bp = nt * TB

    # Single host-side concat + bf16 cast: dense0 becomes one K=S+A matmul
    # and one input DMA stream.  Zero-padded rows only see bias-only
    # hard_swish and are sliced off at the end (no NaN/Inf risk).
    x = jnp.concatenate([s, a], axis=1).astype(bf16)
    if Bp != B:
        x = jnp.pad(x, ((0, Bp - B), (0, 0)))

    # Weight prep (tiny, once per call): bf16 matmul operands, f32 biases and
    # output-layer row vectors.  wf fuses dense1 with the x1-half of dense2.
    w0 = params["w0"].astype(bf16)                                       # (SA, M)
    wf = jnp.concatenate([params["w2"][:M], params["w1"]], axis=1).astype(bf16)  # (M, 3M)
    w2b = params["w2"][M:].astype(bf16)                                  # (M, 2M)
    b0 = params["b0"].astype(f32)                                        # (1, M)
    b1 = params["b1"].astype(f32)                                        # (1, M)
    b2 = params["b2"].astype(f32)                                        # (1, 2M)
    wo = params["wo"]                                                    # (4M, 1)
    wo1 = wo[0:M].T.astype(f32)                                          # (1, M)
    wo2 = wo[M:2 * M].T.astype(f32)                                      # (1, M)
    wo3a = wo[2 * M:3 * M].T.astype(f32)                                 # (1, M)
    wo3b = wo[3 * M:].T.astype(f32)                                      # (1, M)
    bo = params["bo"].astype(f32)                                        # (1, 1) -> SMEM

    grid = (nt,)
    resident = lambda i: (0, 0)      # weights: same block every grid step
    batch_tile = lambda i: (i, 0)    # stream over the batch

    in_specs = [
        pl.BlockSpec((TB, SA), batch_tile),
        pl.BlockSpec((SA, M), resident),
        pl.BlockSpec((1, M), resident),
        pl.BlockSpec((M, 3 * M), resident),
        pl.BlockSpec((1, M), resident),
        pl.BlockSpec((M, 2 * M), resident),
        pl.BlockSpec((1, 2 * M), resident),
        pl.BlockSpec((1, M), resident),
        pl.BlockSpec((1, M), resident),
        pl.BlockSpec((1, M), resident),
        pl.BlockSpec((1, M), resident),
        pl.BlockSpec(memory_space=pltpu.MemorySpace.SMEM),   # bo scalar
    ]
    # TODO(synk): if profiling shows masked-vst pressure (v5e), repack the
    # (TB, 1) output into a lane-dense (Bp//128, 128) slab.
    out_specs = pl.BlockSpec((TB, 1), batch_tile)

    flops = 2 * Bp * (SA * M + 3 * M * M + 2 * M * M + 4 * M)
    bytes_accessed = (Bp * SA * 2 + Bp * 4
                      + (SA * M + 5 * M * M) * 2
                      + (8 * M + 1) * 4)
    cost = pl.CostEstimate(flops=flops, transcendentals=0,
                           bytes_accessed=bytes_accessed)

    out = pl.pallas_call(
        critic_kernel,
        out_shape=jax.ShapeDtypeStruct((Bp, 1), f32),
        grid=grid,
        in_specs=in_specs,
        out_specs=out_specs,
        compiler_params=pltpu.CompilerParams(
            dimension_semantics=("parallel",)),
        cost_estimate=cost,
    )(x, w0, b0, wf, b1, w2b, b2, wo1, wo2, wo3a, wo3b, bo)

    return out[:B]


def critic_forward_ref(s, a, params):
    """Plain-JAX reference mirroring the PyTorch op sequence with the same
    numerics as the kernel (bf16 matmul operands, f32 accumulation)."""
    bf16, f32 = jnp.bfloat16, jnp.float32
    x = jnp.concatenate([s, a], axis=1)
    x1 = _hard_swish(jnp.dot(x.astype(bf16), params["w0"].astype(bf16),
                             preferred_element_type=f32) + params["b0"])
    h1 = _hard_swish(jnp.dot(x1.astype(bf16), params["w1"].astype(bf16),
                             preferred_element_type=f32) + params["b1"])
    x2 = jnp.concatenate([x1, h1], axis=1)
    h2 = _hard_swish(jnp.dot(x2.astype(bf16), params["w2"].astype(bf16),
                             preferred_element_type=f32) + params["b2"])
    x3 = jnp.concatenate([x2, h2], axis=1)
    return x3 @ params["wo"] + params["bo"]


if __name__ == "__main__":
    B, STATE_DIM, ACTION_DIM, MID_DIM = 8, 12, 4, 32

    key = jax.random.PRNGKey(0)
    k_s, k_a, k_p = jax.random.split(key, 3)

    s = jax.random.normal(k_s, (B, STATE_DIM), jnp.float32)
    a = jax.random.normal(k_a, (B, ACTION_DIM), jnp.float32)
    params = init_critic_params(k_p, STATE_DIM, ACTION_DIM, MID_DIM)

    out = critic_forward(s, a, params)
    jax.block_until_ready(out)

    ref = critic_forward_ref(s, a, params)
    assert out.shape == (B, 1)
    max_diff = float(jnp.max(jnp.abs(out - ref)))
    assert jnp.allclose(out, ref, atol=1e-2, rtol=1e-2), max_diff

    print("KERNEL_OK")
</pallas_src>

<mosaic_0001>
module attributes {stable_mosaic.version = 11 : i64} {
  func.func @critic_kernel(%arg0: i32, %arg1: memref<16x16xbf16, #tpu.memory_space<vmem>>, %arg2: memref<16x32xbf16, #tpu.memory_space<vmem>>, %arg3: memref<1x32xf32, #tpu.memory_space<vmem>>, %arg4: memref<32x96xbf16, #tpu.memory_space<vmem>>, %arg5: memref<1x32xf32, #tpu.memory_space<vmem>>, %arg6: memref<32x64xbf16, #tpu.memory_space<vmem>>, %arg7: memref<1x64xf32, #tpu.memory_space<vmem>>, %arg8: memref<1x32xf32, #tpu.memory_space<vmem>>, %arg9: memref<1x32xf32, #tpu.memory_space<vmem>>, %arg10: memref<1x32xf32, #tpu.memory_space<vmem>>, %arg11: memref<1x32xf32, #tpu.memory_space<vmem>>, %arg12: memref<1x1xf32, #tpu.memory_space<smem>>, %arg13: memref<16x1xf32, #tpu.memory_space<vmem>>) attributes {dimension_semantics = [#tpu.dimension_semantics<parallel>], iteration_bounds = array<i64: 1>, scalar_prefetch = 0 : i64, scratch_operands = 0 : i64, tpu.core_type = #tpu.core_type<tc>, window_params = [{transform_indices = @transform_0, window_bounds = array<i64: 16, 16>}, {pipeline_mode = #tpu.pipeline_mode<synchronous>, transform_indices = @transform_1, window_bounds = array<i64: 16, 32>}, {pipeline_mode = #tpu.pipeline_mode<synchronous>, transform_indices = @transform_2, window_bounds = array<i64: 1, 32>}, {pipeline_mode = #tpu.pipeline_mode<synchronous>, transform_indices = @transform_3, window_bounds = array<i64: 32, 96>}, {pipeline_mode = #tpu.pipeline_mode<synchronous>, transform_indices = @transform_4, window_bounds = array<i64: 1, 32>}, {pipeline_mode = #tpu.pipeline_mode<synchronous>, transform_indices = @transform_5, window_bounds = array<i64: 32, 64>}, {pipeline_mode = #tpu.pipeline_mode<synchronous>, transform_indices = @transform_6, window_bounds = array<i64: 1, 64>}, {pipeline_mode = #tpu.pipeline_mode<synchronous>, transform_indices = @transform_7, window_bounds = array<i64: 1, 32>}, {pipeline_mode = #tpu.pipeline_mode<synchronous>, transform_indices = @transform_8, window_bounds = array<i64: 1, 32>}, {pipeline_mode = #tpu.pipeline_mode<synchronous>, transform_indices = @transform_9, window_bounds = array<i64: 1, 32>}, {pipeline_mode = #tpu.pipeline_mode<synchronous>, transform_indices = @transform_10, window_bounds = array<i64: 1, 32>}, {transform_indices = @transform_11, window_bounds = array<i64: 1, 1>}, {transform_indices = @transform_12, window_bounds = array<i64: 16, 1>}]} {
    %c0 = arith.constant 0 : index
    %c0_0 = arith.constant 0 : index
    %0 = vector.load %arg1[%c0, %c0_0] : memref<16x16xbf16, #tpu.memory_space<vmem>>, vector<16x16xbf16>
    %c0_1 = arith.constant 0 : index
    %c0_2 = arith.constant 0 : index
    %1 = vector.load %arg2[%c0_1, %c0_2] : memref<16x32xbf16, #tpu.memory_space<vmem>>, vector<16x32xbf16>
    %cst = arith.constant dense<0.000000e+00> : vector<16x32xf32>
    %2 = tpu.matmul %0, %1, %cst {dimension_numbers = #tpu.dot_dimension_numbers<[1], [0], [0], [1], [0, 0, 1, 1], [], []>} : vector<16x16xbf16>, vector<16x32xbf16>, vector<16x32xf32> -> vector<16x32xf32>
    %c0_3 = arith.constant 0 : index
    %c0_4 = arith.constant 0 : index
    %3 = vector.load %arg3[%c0_3, %c0_4] : memref<1x32xf32, #tpu.memory_space<vmem>>, vector<1x32xf32>
    %4 = vector.broadcast %3 : vector<1x32xf32> to vector<16x32xf32>
    %5 = arith.addf %2, %4 : vector<16x32xf32>
    %cst_5 = arith.constant 3.000000e+00 : f32
    %6 = vector.broadcast %cst_5 : f32 to vector<16x32xf32>
    %7 = arith.addf %5, %6 : vector<16x32xf32>
    %cst_6 = arith.constant 0.000000e+00 : f32
    %cst_7 = arith.constant 6.000000e+00 : f32
    %8 = vector.broadcast %cst_6 : f32 to vector<16x32xf32>
    %9 = arith.maximumf %8, %7 : vector<16x32xf32>
    %10 = vector.broadcast %cst_7 : f32 to vector<16x32xf32>
    %11 = arith.minimumf %10, %9 : vector<16x32xf32>
    %cst_8 = arith.constant 0.166666672 : f32
    %12 = vector.broadcast %cst_8 : f32 to vector<16x32xf32>
    %13 = arith.mulf %11, %12 : vector<16x32xf32>
    %14 = arith.mulf %13, %5 : vector<16x32xf32>
    %c0_9 = arith.constant 0 : index
    %c0_10 = arith.constant 0 : index
    %15 = vector.load %arg8[%c0_9, %c0_10] : memref<1x32xf32, #tpu.memory_space<vmem>>, vector<1x32xf32>
    %16 = vector.broadcast %15 : vector<1x32xf32> to vector<16x32xf32>
    %17 = arith.mulf %14, %16 : vector<16x32xf32>
    %18 = arith.truncf %14 : vector<16x32xf32> to vector<16x32xbf16>
    %c0_11 = arith.constant 0 : index
    %c0_12 = arith.constant 0 : index
    %19 = vector.load %arg4[%c0_11, %c0_12] : memref<32x96xbf16, #tpu.memory_space<vmem>>, vector<32x96xbf16>
    %cst_13 = arith.constant dense<0.000000e+00> : vector<16x96xf32>
    %20 = tpu.matmul %18, %19, %cst_13 {dimension_numbers = #tpu.dot_dimension_numbers<[1], [0], [0], [1], [0, 0, 1, 1], [], []>} : vector<16x32xbf16>, vector<32x96xbf16>, vector<16x96xf32> -> vector<16x96xf32>
    %21 = vector.extract_strided_slice %20 {offsets = [0, 64], sizes = [16, 32], strides = [1, 1]} : vector<16x96xf32> to vector<16x32xf32>
    %c0_14 = arith.constant 0 : index
    %c0_15 = arith.constant 0 : index
    %22 = vector.load %arg5[%c0_14, %c0_15] : memref<1x32xf32, #tpu.memory_space<vmem>>, vector<1x32xf32>
    %23 = vector.broadcast %22 : vector<1x32xf32> to vector<16x32xf32>
    %24 = arith.addf %21, %23 : vector<16x32xf32>
    %cst_16 = arith.constant 3.000000e+00 : f32
    %25 = vector.broadcast %cst_16 : f32 to vector<16x32xf32>
    %26 = arith.addf %24, %25 : vector<16x32xf32>
    %cst_17 = arith.constant 0.000000e+00 : f32
    %cst_18 = arith.constant 6.000000e+00 : f32
    %27 = vector.broadcast %cst_17 : f32 to vector<16x32xf32>
    %28 = arith.maximumf %27, %26 : vector<16x32xf32>
    %29 = vector.broadcast %cst_18 : f32 to vector<16x32xf32>
    %30 = arith.minimumf %29, %28 : vector<16x32xf32>
    %cst_19 = arith.constant 0.166666672 : f32
    %31 = vector.broadcast %cst_19 : f32 to vector<16x32xf32>
    %32 = arith.mulf %30, %31 : vector<16x32xf32>
    %33 = arith.mulf %32, %24 : vector<16x32xf32>
    %c0_20 = arith.constant 0 : index
    %c0_21 = arith.constant 0 : index
    %34 = vector.load %arg9[%c0_20, %c0_21] : memref<1x32xf32, #tpu.memory_space<vmem>>, vector<1x32xf32>
    %35 = vector.broadcast %34 : vector<1x32xf32> to vector<16x32xf32>
    %36 = arith.mulf %33, %35 : vector<16x32xf32>
    %37 = arith.addf %17, %36 : vector<16x32xf32>
    %38 = arith.truncf %33 : vector<16x32xf32> to vector<16x32xbf16>
    %39 = vector.extract_strided_slice %20 {offsets = [0, 0], sizes = [16, 64], strides = [1, 1]} : vector<16x96xf32> to vector<16x64xf32>
    %c0_22 = arith.constant 0 : index
    %c0_23 = arith.constant 0 : index
    %40 = vector.load %arg6[%c0_22, %c0_23] : memref<32x64xbf16, #tpu.memory_space<vmem>>, vector<32x64xbf16>
    %cst_24 = arith.constant dense<0.000000e+00> : vector<16x64xf32>
    %41 = tpu.matmul %38, %40, %cst_24 {dimension_numbers = #tpu.dot_dimension_numbers<[1], [0], [0], [1], [0, 0, 1, 1], [], []>} : vector<16x32xbf16>, vector<32x64xbf16>, vector<16x64xf32> -> vector<16x64xf32>
    %42 = arith.addf %39, %41 : vector<16x64xf32>
    %c0_25 = arith.constant 0 : index
    %c0_26 = arith.constant 0 : index
    %43 = vector.load %arg7[%c0_25, %c0_26] : memref<1x64xf32, #tpu.memory_space<vmem>>, vector<1x64xf32>
    %44 = vector.broadcast %43 : vector<1x64xf32> to vector<16x64xf32>
    %45 = arith.addf %42, %44 : vector<16x64xf32>
    %cst_27 = arith.constant 3.000000e+00 : f32
    %46 = vector.broadcast %cst_27 : f32 to vector<16x64xf32>
    %47 = arith.addf %45, %46 : vector<16x64xf32>
    %cst_28 = arith.constant 0.000000e+00 : f32
    %cst_29 = arith.constant 6.000000e+00 : f32
    %48 = vector.broadcast %cst_28 : f32 to vector<16x64xf32>
    %49 = arith.maximumf %48, %47 : vector<16x64xf32>
    %50 = vector.broadcast %cst_29 : f32 to vector<16x64xf32>
    %51 = arith.minimumf %50, %49 : vector<16x64xf32>
    %cst_30 = arith.constant 0.166666672 : f32
    %52 = vector.broadcast %cst_30 : f32 to vector<16x64xf32>
    %53 = arith.mulf %51, %52 : vector<16x64xf32>
    %54 = arith.mulf %53, %45 : vector<16x64xf32>
    %55 = vector.extract_strided_slice %54 {offsets = [0, 0], sizes = [16, 32], strides = [1, 1]} : vector<16x64xf32> to vector<16x32xf32>
    %c0_31 = arith.constant 0 : index
    %c0_32 = arith.constant 0 : index
    %56 = vector.load %arg10[%c0_31, %c0_32] : memref<1x32xf32, #tpu.memory_space<vmem>>, vector<1x32xf32>
    %57 = vector.broadcast %56 : vector<1x32xf32> to vector<16x32xf32>
    %58 = arith.mulf %55, %57 : vector<16x32xf32>
    %59 = arith.addf %37, %58 : vector<16x32xf32>
    %60 = vector.extract_strided_slice %54 {offsets = [0, 32], sizes = [16, 32], strides = [1, 1]} : vector<16x64xf32> to vector<16x32xf32>
    %c0_33 = arith.constant 0 : index
    %c0_34 = arith.constant 0 : index
    %61 = vector.load %arg11[%c0_33, %c0_34] : memref<1x32xf32, #tpu.memory_space<vmem>>, vector<1x32xf32>
    %62 = vector.broadcast %61 : vector<1x32xf32> to vector<16x32xf32>
    %63 = arith.mulf %60, %62 : vector<16x32xf32>
    %64 = arith.addf %59, %63 : vector<16x32xf32>
    %cst_35 = arith.constant dense<0.000000e+00> : vector<16xf32>
    %65 = vector.multi_reduction <add>, %64, %cst_35 [1] : vector<16x32xf32> to vector<16xf32>
    %66 = vector.shape_cast %65 : vector<16xf32> to vector<16x1xf32>
    %c0_36 = arith.constant 0 : index
    %c0_37 = arith.constant 0 : index
    %67 = memref.load %arg12[%c0_36, %c0_37] : memref<1x1xf32, #tpu.memory_space<smem>>
    %68 = vector.broadcast %67 : f32 to vector<16x1xf32>
    %69 = arith.addf %66, %68 : vector<16x1xf32>
    %c0_38 = arith.constant 0 : index
    %c0_39 = arith.constant 0 : index
    %70 = vector.load %arg13[%c0_38, %c0_39] : memref<16x1xf32, #tpu.memory_space<vmem>>, vector<16x1xf32>
    tpu.vector_store %arg13[%c0_38, %c0_39], %69 {strides = array<i32>} : memref<16x1xf32, #tpu.memory_space<vmem>>, vector<16x1xf32>,
    return
  }
  func.func @transform_0(%arg0: i32) -> (i32, i32) {
    %c0_i32 = arith.constant 0 : i32
    %c0_i32_0 = arith.constant 0 : i32
    return %arg0, %c0_i32 : i32, i32
  }
  func.func @transform_1(%arg0: i32) -> (i32, i32) {
    %c0_i32 = arith.constant 0 : i32
    %c0_i32_0 = arith.constant 0 : i32
    %c0_i32_1 = arith.constant 0 : i32
    return %c0_i32, %c0_i32_0 : i32, i32
  }
  func.func @transform_2(%arg0: i32) -> (i32, i32) {
    %c0_i32 = arith.constant 0 : i32
    %c0_i32_0 = arith.constant 0 : i32
    %c0_i32_1 = arith.constant 0 : i32
    return %c0_i32, %c0_i32_0 : i32, i32
  }
  func.func @transform_3(%arg0: i32) -> (i32, i32) {
    %c0_i32 = arith.constant 0 : i32
    %c0_i32_0 = arith.constant 0 : i32
    %c0_i32_1 = arith.constant 0 : i32
    return %c0_i32, %c0_i32_0 : i32, i32
  }
  func.func @transform_4(%arg0: i32) -> (i32, i32) {
    %c0_i32 = arith.constant 0 : i32
    %c0_i32_0 = arith.constant 0 : i32
    %c0_i32_1 = arith.constant 0 : i32
    return %c0_i32, %c0_i32_0 : i32, i32
  }
  func.func @transform_5(%arg0: i32) -> (i32, i32) {
    %c0_i32 = arith.constant 0 : i32
    %c0_i32_0 = arith.constant 0 : i32
    %c0_i32_1 = arith.constant 0 : i32
    return %c0_i32, %c0_i32_0 : i32, i32
  }
  func.func @transform_6(%arg0: i32) -> (i32, i32) {
    %c0_i32 = arith.constant 0 : i32
    %c0_i32_0 = arith.constant 0 : i32
    %c0_i32_1 = arith.constant 0 : i32
    return %c0_i32, %c0_i32_0 : i32, i32
  }
  func.func @transform_7(%arg0: i32) -> (i32, i32) {
    %c0_i32 = arith.constant 0 : i32
    %c0_i32_0 = arith.constant 0 : i32
    %c0_i32_1 = arith.constant 0 : i32
    return %c0_i32, %c0_i32_0 : i32, i32
  }
  func.func @transform_8(%arg0: i32) -> (i32, i32) {
    %c0_i32 = arith.constant 0 : i32
    %c0_i32_0 = arith.constant 0 : i32
    %c0_i32_1 = arith.constant 0 : i32
    return %c0_i32, %c0_i32_0 : i32, i32
  }
  func.func @transform_9(%arg0: i32) -> (i32, i32) {
    %c0_i32 = arith.constant 0 : i32
    %c0_i32_0 = arith.constant 0 : i32
    %c0_i32_1 = arith.constant 0 : i32
    return %c0_i32, %c0_i32_0 : i32, i32
  }
  func.func @transform_10(%arg0: i32) -> (i32, i32) {
    %c0_i32 = arith.constant 0 : i32
    %c0_i32_0 = arith.constant 0 : i32
    %c0_i32_1 = arith.constant 0 : i32
    return %c0_i32, %c0_i32_0 : i32, i32
  }
  func.func @transform_11(%arg0: i32) -> (i32, i32) {
    %c0_i32 = arith.constant 0 : i32
    %c0_i32_0 = arith.constant 0 : i32
    %c0_i32_1 = arith.constant 0 : i32
    return %c0_i32, %c0_i32_0 : i32, i32
  }
  func.func @transform_12(%arg0: i32) -> (i32, i32) {
    %c0_i32 = arith.constant 0 : i32
    %c0_i32_0 = arith.constant 0 : i32
    return %arg0, %c0_i32 : i32, i32
  }
}

</mosaic_0001>

<llo_original>
// kernel: critic_forward.1
$region0: #{critic_forward.1}
  #allocation0 [shape = 'u32[]', space=smem, size = 0x4, offset = 0x4, fixed_abs, tag = 'smem constant byte address 0x4 - core index']
  #allocation1 [shape = 'u32[144,128]{1,0:T(1,128)}', space=vmem, size = 0x12000, scoped, tag = 'internal scratch']
  #allocation2 [shape = 'f32[1,1]{1,0:T(1,128)S(6)}', space=smem, size = 0x200, scoped, tag = 'scoped memory for critic_forward.1']
  %s0 = inlined_call_operand.vmem [shape: bf16[16,16], index: 0, kind: input, shape index: {}]
  %s1 = inlined_call_operand.vmem [shape: bf16[16,32], index: 1, kind: input, shape index: {}]
  %s2 = inlined_call_operand.vmem [shape: f32[1,32], index: 2, kind: input, shape index: {}]
  %s3 = inlined_call_operand.vmem [shape: bf16[32,96], index: 3, kind: input, shape index: {}]
  %s4 = inlined_call_operand.vmem [shape: f32[1,32], index: 4, kind: input, shape index: {}]
  %s5 = inlined_call_operand.vmem [shape: bf16[32,64], index: 5, kind: input, shape index: {}]
  %s6 = inlined_call_operand.vmem [shape: f32[1,64], index: 6, kind: input, shape index: {}]
  %s7 = inlined_call_operand.vmem [shape: f32[1,32], index: 7, kind: input, shape index: {}]
  %s8 = inlined_call_operand.vmem [shape: f32[1,32], index: 8, kind: input, shape index: {}]
  %s9 = inlined_call_operand.vmem [shape: f32[1,32], index: 9, kind: input, shape index: {}]
  %s10 = inlined_call_operand.vmem [shape: f32[1,32], index: 10, kind: input, shape index: {}]
  %s11 = inlined_call_operand.<no memory space> [shape: f32[1,1], index: 11, kind: input, shape index: {}]
  %s12 = inlined_call_operand.vmem [shape: f32[16,1], index: 12, kind: output, shape index: {}]
  %s13 = sld [smem:[#allocation0]]
  $region58: #{critic_forward.1} parent=0
    _
  %s15 = ssub.s32 1, %s13
  %s16 = scalar_select 0, %s15, %s13
  %17 = sst [smem:[#allocation2]] %s11
  // Predicated region
  $region2: #{critic_forward.1} parent=0 // pred_check
    _
  $region3: #{critic_forward.1} parent=0 // pred_check_branch
    %19 = sbr.rel (0) target = $region5
  $region4: #{critic_forward.1} parent=0 // pred_region
    _
  $region5: #{critic_forward.1} parent=0 // pred_fallthru
    _
  // Predicated region
  $region6: #{critic_forward.1} parent=0 // pred_check
    _
  $region7: #{critic_forward.1} parent=0 // pred_check_branch
    %21 = sbr.rel (0) target = $region9
  $region8: #{critic_forward.1} parent=0 // pred_region
    _
  $region9: #{critic_forward.1} parent=0 // pred_fallthru
    _
  // Predicated region
  $region10: #{critic_forward.1} parent=0 // pred_check
    _
  $region11: #{critic_forward.1} parent=0 // pred_check_branch
    %23 = sbr.rel (0) target = $region13
  $region12: #{critic_forward.1} parent=0 // pred_region
    _
  $region13: #{critic_forward.1} parent=0 // pred_fallthru
    _
  // Predicated region
  $region14: #{critic_forward.1} parent=0 // pred_check
    _
  $region15: #{critic_forward.1} parent=0 // pred_check_branch
    %25 = sbr.rel (0) target = $region17
  $region16: #{critic_forward.1} parent=0 // pred_region
    _
  $region17: #{critic_forward.1} parent=0 // pred_fallthru
    _
  // Predicated region
  $region18: #{critic_forward.1} parent=0 // pred_check
    _
  $region19: #{critic_forward.1} parent=0 // pred_check_branch
    %27 = sbr.rel (0) target = $region21
  $region20: #{critic_forward.1} parent=0 // pred_region
    _
  $region21: #{critic_forward.1} parent=0 // pred_fallthru
    _
  // Predicated region
  $region22: #{critic_forward.1} parent=0 // pred_check
    _
  $region23: #{critic_forward.1} parent=0 // pred_check_branch
    %29 = sbr.rel (0) target = $region25
  $region24: #{critic_forward.1} parent=0 // pred_region
    _
  $region25: #{critic_forward.1} parent=0 // pred_fallthru
    _
  // Predicated region
  $region26: #{critic_forward.1} parent=0 // pred_check
    _
  $region27: #{critic_forward.1} parent=0 // pred_check_branch
    %31 = sbr.rel (0) target = $region29
  $region28: #{critic_forward.1} parent=0 // pred_region
    _
  $region29: #{critic_forward.1} parent=0 // pred_fallthru
    _
  // Predicated region
  $region30: #{critic_forward.1} parent=0 // pred_check
    _
  $region31: #{critic_forward.1} parent=0 // pred_check_branch
    %33 = sbr.rel (0) target = $region33
  $region32: #{critic_forward.1} parent=0 // pred_region
    _
  $region33: #{critic_forward.1} parent=0 // pred_fallthru
    _
  // Predicated region
  $region34: #{critic_forward.1} parent=0 // pred_check
    _
  $region35: #{critic_forward.1} parent=0 // pred_check_branch
    %35 = sbr.rel (0) target = $region37
  $region36: #{critic_forward.1} parent=0 // pred_region
    _
  $region37: #{critic_forward.1} parent=0 // pred_fallthru
    _
  // Predicated region
  $region38: #{critic_forward.1} parent=0 // pred_check
    _
  $region39: #{critic_forward.1} parent=0 // pred_check_branch
    %37 = sbr.rel (0) target = $region41
  $region40: #{critic_forward.1} parent=0 // pred_region
    _
  $region41: #{critic_forward.1} parent=0 // pred_fallthru
    _
  // Predicated region
  $region42: #{critic_forward.1} parent=0 // pred_check
    _
  $region43: #{critic_forward.1} parent=0 // pred_check_branch
    %39 = sbr.rel (0) target = $region45
  $region44: #{critic_forward.1} parent=0 // pred_region
    _
  $region45: #{critic_forward.1} parent=0 // pred_fallthru
    _
  // Predicated region
  $region46: #{critic_forward.1} parent=0 // pred_check
    _
  $region47: #{critic_forward.1} parent=0 // pred_check_branch
    %41 = sbr.rel (0) target = $region49
  $region48: #{critic_forward.1} parent=0 // pred_region
    _
  $region49: #{critic_forward.1} parent=0 // pred_fallthru
    _
  %v43 = vld [vmem:[%s0] sm:$0xf]
  %v44 = vld [vmem:[%s0 + $0x4] sm:$0xf]
  %v45 = vld [vmem:[%s1] sm:$0xf]
  %v46 = vld [vmem:[%s1 + $0x4] sm:$0xf]
  %v47 = vld [vmem:[%s2] sm:$0x1]
  %v49 = vlaneseq
  %v50 = vshrl.u32 %v49, 7
  %v51 = vsub.s32 0, %v50
  %v52 = vrot.slane %v47, %v51
  %v56 = vunpack.c.l.b16 %v43
  %v57 = vunpack.c.l.b16 %v44
  %v58 = vpack.c.b16 %v57, %v56
  %v61 = vunpack.c.l.b16 %v45
  %v62 = vunpack.c.l.b16 %v46
  %v63 = vpack.c.b16 %v62, %v61
  %vm65 = vcmask 130048
  %v67 = vsel %vm65, %v58, 0
  %69 = vmatprep.subr.bf16.mxu0 0
  %70 = vmatpush1.bf16.msra.mxu0 %v63
  %71 = vmatprep.subr.bf16.mxu0 0
  %72 = vmatpush1.bf16.msra.mxu0 0
  %73 = vmatprep.subr.bf16.mxu0 0
  %74 = vmatpush1.bf16.msra.mxu0 0
  %75 = vmatprep.subr.bf16.mxu0 0
  %76 = vmatpush1.bf16.msra.mxu0 0
  %77 = vmatprep.subr.bf16.mxu0 0
  %78 = vmatpush1.bf16.msra.mxu0 0
  %79 = vmatprep.subr.bf16.mxu0 0
  %80 = vmatpush1.bf16.msra.mxu0 0
  %81 = vmatprep.subr.bf16.mxu0 0
  %82 = vmatpush1.bf16.msra.mxu0 0
  %83 = vmatprep.subr.bf16.mxu0 0
  %84 = vmatpush1.bf16.msra.mxu0 0
  %85 = vmatprep.subr.bf16.mxu0 0
  %86 = vmatpush1.bf16.msra.mxu0 0
  %87 = vmatprep.subr.bf16.mxu0 0
  %88 = vmatpush1.bf16.msra.mxu0 0
  %89 = vmatprep.subr.bf16.mxu0 0
  %90 = vmatpush1.bf16.msra.mxu0 0
  %91 = vmatprep.subr.bf16.mxu0 0
  %92 = vmatpush1.bf16.msra.mxu0 0
  %93 = vmatprep.subr.bf16.mxu0 0
  %94 = vmatpush1.bf16.msra.mxu0 0
  %95 = vmatprep.subr.bf16.mxu0 0
  %96 = vmatpush1.bf16.msra.mxu0 0
  %97 = vmatprep.subr.bf16.mxu0 0
  %98 = vmatpush1.bf16.msra.mxu0 0
  %99 = vmatprep.subr.bf16.mxu0 0
  %100 = vmatpush1.bf16.msra.mxu0 0
  %101 = vmatprep.mubr.bf16.mxu0 0
  %102 = vmatmul.mubr.bf16.gmra.mrb[0].mxu0 %v67
  %v103 = vpop.f32.mrb[0].mxu0
  %v104 = vadd.f32 %v52, %v103
  %v105 = vpop.f32.mrb[0].mxu0
  %v106 = vpop.f32.mrb[0].mxu0
  %v107 = vadd.f32 %v52, %v106
  %v108 = vpop.f32.mrb[0].mxu0
  %109 = vdwg.mxu0
  %v110 = vadd.f32 %v104, 3.0
  %v111 = vadd.f32 %v107, 3.0
  %v112 = vmax.f32 %v110, 0.0
  %v113 = vmax.f32 %v111, 0.0
  %v114 = vmin.f32 %v112, 6.0
  %v115 = vmin.f32 %v113, 6.0
  %v116 = vmul.f32 %v114, 0.16666667
  %v117 = vmul.f32 %v115, 0.16666667
  %v118 = vmul.f32 %v116, %v104
  %v119 = vmul.f32 %v117, %v107
  %v120 = vld [vmem:[%s7] sm:$0x1]
  %v122 = vlaneseq
  %v123 = vshrl.u32 %v122, 7
  %v124 = vsub.s32 0, %v123
  %v125 = vrot.slane %v120, %v124
  %v127 = vmul.f32 %v118, %v125
  %v128 = vmul.f32 %v119, %v125
  %v129 = vpack.c.bf16 %v119, %v118
  %v130 = vld [vmem:[%s3] sm:$0xf]
  %v131 = vld [vmem:[%s3 + $0x4] sm:$0xf]
  %v132 = vld [vmem:[%s3 + $0x8] sm:$0xf]
  %v133 = vld [vmem:[%s3 + $0xc] sm:$0xf]
  %v138 = vunpack.c.l.b16 %v130
  %v139 = vunpack.c.l.b16 %v131
  %v140 = vunpack.c.l.b16 %v132
  %v141 = vunpack.c.l.b16 %v133
  %v142 = vpack.c.b16 %v139, %v138
  %v143 = vpack.c.b16 %v141, %v140
  %vm146 = vcmask 261120
  %v148 = vsel %vm146, %v129, 0
  %150 = vmatprep.subr.bf16.mxu0 0
  %151 = vmatpush1.bf16.msra.mxu0 %v142
  %152 = vmatprep.subr.bf16.mxu0 0
  %153 = vmatpush1.bf16.msra.mxu0 %v143
  %154 = vmatprep.subr.bf16.mxu0 0
  %155 = vmatpush1.bf16.msra.mxu0 0
  %156 = vmatprep.subr.bf16.mxu0 0
  %157 = vmatpush1.bf16.msra.mxu0 0
  %158 = vmatprep.subr.bf16.mxu0 0
  %159 = vmatpush1.bf16.msra.mxu0 0
  %160 = vmatprep.subr.bf16.mxu0 0
  %161 = vmatpush1.bf16.msra.mxu0 0
  %162 = vmatprep.subr.bf16.mxu0 0
  %163 = vmatpush1.bf16.msra.mxu0 0
  %164 = vmatprep.subr.bf16.mxu0 0
  %165 = vmatpush1.bf16.msra.mxu0 0
  %166 = vmatprep.subr.bf16.mxu0 0
  %167 = vmatpush1.bf16.msra.mxu0 0
  %168 = vmatprep.subr.bf16.mxu0 0
  %169 = vmatpush1.bf16.msra.mxu0 0
  %170 = vmatprep.subr.bf16.mxu0 0
  %171 = vmatpush1.bf16.msra.mxu0 0
  %172 = vmatprep.subr.bf16.mxu0 0
  %173 = vmatpush1.bf16.msra.mxu0 0
  %174 = vmatprep.subr.bf16.mxu0 0
  %175 = vmatpush1.bf16.msra.mxu0 0
  %176 = vmatprep.subr.bf16.mxu0 0
  %177 = vmatpush1.bf16.msra.mxu0 0
  %178 = vmatprep.subr.bf16.mxu0 0
  %179 = vmatpush1.bf16.msra.mxu0 0
  %180 = vmatprep.subr.bf16.mxu0 0
  %181 = vmatpush1.bf16.msra.mxu0 0
  %182 = vmatprep.mubr.bf16.mxu0 0
  %183 = vmatmul.mubr.bf16.gmra.mrb[0].mxu0 %v148
  %v184 = vpop.f32.mrb[0].mxu0
  %v185 = vadd.f32 0.0, %v184
  %v186 = vpop.f32.mrb[0].mxu0
  %v187 = vpop.f32.mrb[0].mxu0
  %v188 = vadd.f32 0.0, %v187
  %v189 = vpop.f32.mrb[0].mxu0
  %190 = vdwg.mxu0
  %v191 = vld [vmem:[%s4] sm:$0x1]
  %v193 = vlaneseq
  %v194 = vshrl.u32 %v193, 7
  %v195 = vsub.s32 0, %v194
  %v196 = vrot.slane %v191, %v195
  %197 = vrot.lane.b32.xlu0 %v196, 64
  %v198 = vpop.permute.xlu0 %197
  %v200 = vadd.f32 %v185, %v198
  %v201 = vadd.f32 %v188, %v198
  %v202 = vadd.f32 %v200, 3.0
  %v203 = vadd.f32 %v201, 3.0
  %v204 = vmax.f32 %v202, 0.0
  %v205 = vmax.f32 %v203, 0.0
  %v206 = vmin.f32 %v204, 6.0
  %v207 = vmin.f32 %v205, 6.0
  %v208 = vmul.f32 %v206, 0.16666667
  %v209 = vmul.f32 %v207, 0.16666667
  %v210 = vmul.f32 %v208, %v200
  %v211 = vmul.f32 %v209, %v201
  %v212 = vld [vmem:[%s8] sm:$0x1]
  %v214 = vlaneseq
  %v215 = vshrl.u32 %v214, 7
  %v216 = vsub.s32 0, %v215
  %v217 = vrot.slane %v212, %v216
  %218 = vrot.lane.b32.xlu0 %v217, 64
  %v219 = vpop.permute.xlu0 %218
  %v221 = vmul.f32 %v210, %v219
  %v222 = vmul.f32 %v211, %v219
  %225 = vrot.lane.b32.xlu0 %v221, 64
  %v226 = vpop.permute.xlu0 %225
  %227 = vrot.lane.b32.xlu0 %v222, 64
  %v228 = vpop.permute.xlu0 %227
  %v231 = vadd.f32 %v127, %v226
  %v232 = vadd.f32 %v128, %v228
  %v233 = vpack.c.bf16 %v211, %v210
  %v234 = vld [vmem:[%s5] sm:$0xf]
  %v235 = vld [vmem:[%s5 + $0x4] sm:$0xf]
  %v236 = vld [vmem:[%s5 + $0x8] sm:$0xf]
  %v237 = vld [vmem:[%s5 + $0xc] sm:$0xf]
  %239 = vrot.lane.b32.xlu0 %v233, 64
  %v240 = vpop.permute.xlu0 %239
  %v245 = vunpack.c.l.b16 %v234
  %v246 = vunpack.c.l.b16 %v235
  %v247 = vunpack.c.l.b16 %v236
  %v248 = vunpack.c.l.b16 %v237
  %v249 = vpack.c.b16 %v246, %v245
  %v250 = vpack.c.b16 %v248, %v247
  %v254 = vsel %vm146, %v240, 0
  %256 = vmatprep.subr.bf16.mxu0 0
  %257 = vmatpush1.bf16.msra.mxu0 %v249
  %258 = vmatprep.subr.bf16.mxu0 0
  %259 = vmatpush1.bf16.msra.mxu0 %v250
  %260 = vmatprep.subr.bf16.mxu0 0
  %261 = vmatpush1.bf16.msra.mxu0 0
  %262 = vmatprep.subr.bf16.mxu0 0
  %263 = vmatpush1.bf16.msra.mxu0 0
  %264 = vmatprep.subr.bf16.mxu0 0
  %265 = vmatpush1.bf16.msra.mxu0 0
  %266 = vmatprep.subr.bf16.mxu0 0
  %267 = vmatpush1.bf16.msra.mxu0 0
  %268 = vmatprep.subr.bf16.mxu0 0
  %269 = vmatpush1.bf16.msra.mxu0 0
  %270 = vmatprep.subr.bf16.mxu0 0
  %271 = vmatpush1.bf16.msra.mxu0 0
  %272 = vmatprep.subr.bf16.mxu0 0
  %273 = vmatpush1.bf16.msra.mxu0 0
  %274 = vmatprep.subr.bf16.mxu0 0
  %275 = vmatpush1.bf16.msra.mxu0 0
  %276 = vmatprep.subr.bf16.mxu0 0
  %277 = vmatpush1.bf16.msra.mxu0 0
  %278 = vmatprep.subr.bf16.mxu0 0
  %279 = vmatpush1.bf16.msra.mxu0 0
  %280 = vmatprep.subr.bf16.mxu0 0
  %281 = vmatpush1.bf16.msra.mxu0 0
  %282 = vmatprep.subr.bf16.mxu0 0
  %283 = vmatpush1.bf16.msra.mxu0 0
  %284 = vmatprep.subr.bf16.mxu0 0
  %285 = vmatpush1.bf16.msra.mxu0 0
  %286 = vmatprep.subr.bf16.mxu0 0
  %287 = vmatpush1.bf16.msra.mxu0 0
  %288 = vmatprep.mubr.bf16.mxu0 0
  %289 = vmatmul.mubr.bf16.gmra.mrb[0].mxu0 %v254
  %v290 = vpop.f32.mrb[0].mxu0
  %v291 = vadd.f32 0.0, %v290
  %v292 = vpop.f32.mrb[0].mxu0
  %v293 = vpop.f32.mrb[0].mxu0
  %v294 = vadd.f32 0.0, %v293
  %v295 = vpop.f32.mrb[0].mxu0
  %296 = vdwg.mxu0
  %v297 = vadd.f32 %v185, %v291
  %v298 = vadd.f32 %v188, %v294
  %v299 = vld [vmem:[%s6] sm:$0x1]
  %v301 = vlaneseq
  %v302 = vshrl.u32 %v301, 7
  %v303 = vsub.s32 0, %v302
  %v304 = vrot.slane %v299, %v303
  %v306 = vadd.f32 %v297, %v304
  %v307 = vadd.f32 %v298, %v304
  %v308 = vadd.f32 %v306, 3.0
  %v309 = vadd.f32 %v307, 3.0
  %v310 = vmax.f32 %v308, 0.0
  %v311 = vmax.f32 %v309, 0.0
  %v312 = vmin.f32 %v310, 6.0
  %v313 = vmin.f32 %v311, 6.0
  %v314 = vmul.f32 %v312, 0.16666667
  %v315 = vmul.f32 %v313, 0.16666667
  %v316 = vmul.f32 %v314, %v306
  %v317 = vmul.f32 %v315, %v307
  %v318 = vld [vmem:[%s9] sm:$0x1]
  %v320 = vlaneseq
  %v321 = vshrl.u32 %v320, 7
  %v322 = vsub.s32 0, %v321
  %v323 = vrot.slane %v318, %v322
  %v325 = vmul.f32 %v316, %v323
  %v326 = vmul.f32 %v317, %v323
  %v327 = vadd.f32 %v231, %v325
  %v328 = vadd.f32 %v232, %v326
  %v329 = vld [vmem:[%s10] sm:$0x1]
  %v331 = vlaneseq
  %v332 = vshrl.u32 %v331, 7
  %v333 = vsub.s32 0, %v332
  %v334 = vrot.slane %v329, %v333
  %335 = vrot.lane.b32.xlu0 %v334, 32
  %v336 = vpop.permute.xlu0 %335
  %v338 = vmul.f32 %v316, %v336
  %v339 = vmul.f32 %v317, %v336
  %342 = vrot.lane.b32.xlu0 %v338, 96
  %v343 = vpop.permute.xlu0 %342
  %344 = vrot.lane.b32.xlu0 %v339, 96
  %v345 = vpop.permute.xlu0 %344
  %v348 = vadd.f32 %v327, %v343
  %v349 = vadd.f32 %v328, %v345
  %v350 = vsel %vm146, %v348, 0.0
  %351 = vadd.xlane.f32.xlu0 %v350
  %v352 = vpop.xlane.xlu0 %351
  %v353 = vsel %vm146, %v349, 0.0
  %354 = vadd.xlane.f32.xlu0 %v353
  %v355 = vpop.xlane.xlu0 %354
  %s356 = sld [smem:[#allocation2]]
  %v357 = vstv %s356
  %v358 = vadd.f32 %v352, %v357
  %v359 = vadd.f32 %v355, %v357
  %vm360 = vcmask 7168
  %361 = vst.msk [vmem:[%s12] sm:$0xff] %vm360, %v358
  %362 = vst.msk [vmem:[%s12 + $0x8] sm:$0xff] %vm360, %v359
  // Predicated region
  $region50: #{critic_forward.1} parent=0 // pred_check
    _
  $region51: #{critic_forward.1} parent=0 // pred_check_branch
    %364 = sbr.rel (0) target = $region53
  $region52: #{critic_forward.1} parent=0 // pred_region
    _
  $region53: #{critic_forward.1} parent=0 // pred_fallthru
    _
  // Predicated region
  $region54: #{critic_forward.1} parent=0 // pred_check
    _
  $region55: #{critic_forward.1} parent=0 // pred_check_branch
    %366 = sbr.rel (0) target = $region57
  $region56: #{critic_forward.1} parent=0 // pred_region
    _
  $region57: #{critic_forward.1} parent=0 // pred_fallthru
    _

</llo_original>
